<compile_context>
chip_gen: v7x
topology: tpu7x:2x2x1
jax: 0.10.0
libtpu: 0.0.40
codegen_flags: <defaults>
</compile_context>

<pallas_src>
import functools
import math

import jax
import jax.numpy as jnp
from jax import lax
from jax.experimental import pallas as pl
from jax.experimental.pallas import tpu as pltpu


def _round_up(x, m):
    return ((x + m - 1) // m) * m


def _device_kind():
    try:
        return jax.devices()[0].device_kind.lower()
    except Exception:
        return ""


def _tile_config(kind):
    """Per-generation (tm, tn, vmem_budget, scoped_default, resident_thr)."""
    if "v5" in kind:
        return 512, 256, 48 << 20, 16 << 20, 8 << 20
    if "v6" in kind:
        return 1024, 256, 64 << 20, 32 << 20, 16 << 20
    # v7x / unknown: physical VMEM is 64 MiB -> stay under ~40 MiB.
    return 512, 256, 40 << 20, 32 << 20, 12 << 20


def _vmem_estimate(tm, tn, d_pad, n_pad, fj_resident):
    est = 2 * tm * d_pad * 2                                   # fi double-buffered bf16
    est += (2 * n_pad * d_pad * 2) if fj_resident else (2 * tn * d_pad * 2)
    est += 2 * 4 * (2 * tm + 2 * tn)                           # label / bias tiles
    est += 2 * 2 * 8 * 128 * 4                                 # two (8,128) f32 outputs
    est += 2 * tm * tn * 4                                     # f32 intermediates headroom
    return est


def _partial_8x128(x):
    """(TM, TN) f32 -> (8, 128) partial sum using only vreg-wise VALU adds.

    Folding row tiles via a sublane-split reshape (layout-preserving) and lane
    tiles via static 128-wide slices avoids the XLU scalar reduction that was
    the critical path of the previous version at small D.
    """
    tm, tn = x.shape
    p = jnp.sum(x.reshape(tm // 8, 8, tn), axis=0)    # (8, tn): cross-vreg adds
    out = p[:, :128]
    for b in range(1, tn // 128):                     # fold lane chunks
        out = out + p[:, b * 128:(b + 1) * 128]
    return out


def _push_plus_kernel(fi_ref, fj_ref, li_ref, lj_ref, rbias_ref, cbias_ref,
                      loss_out_ref, valid_out_ref, *, fj_resident):
    """One (TM, TN) tile of the pair matrix; accumulates over the j axis."""
    j = pl.program_id(1)

    @pl.when(j == 0)
    def _init():
        loss_out_ref[...] = jnp.zeros_like(loss_out_ref)
        valid_out_ref[...] = jnp.zeros_like(valid_out_ref)

    tn = lj_ref.shape[-1]
    if fj_resident:
        # Whole feature matrix is VMEM-resident: slice the TN columns here.
        col0 = pl.multiple_of(j * tn, 128)
        fj = fj_ref[pl.ds(col0, tn), :]
    else:
        fj = fj_ref[...]

    # sim[a, b] = <f_i[a], f_j[b]>: bf16 operands, f32 accumulation, contract
    # the D axis of both operands (trans-B semantics, no explicit transpose).
    sim = lax.dot_general(
        fi_ref[...], fj,
        dimension_numbers=(((1,), (1,)), ((), ())),
        preferred_element_type=jnp.float32)                      # (TM, TN) f32

    # losses = margin + pos - (1 - sim); padding is folded into the biases
    # (-1e30 on padded rows / cols kills the hinge), so no >=0 label checks.
    losses = sim + rbias_ref[...] + cbias_ref[...]               # (TM, TN)
    cond = (li_ref[...] != lj_ref[...]) & (losses > 0.0)         # (TM, TN)

    loss_out_ref[...] = loss_out_ref[...] + _partial_8x128(
        jnp.where(cond, losses, 0.0))
    valid_out_ref[...] = valid_out_ref[...] + _partial_8x128(
        jnp.where(cond, 1.0, 0.0))


def push_plus_loss(features, centers, labels, margin=0.7):
    """Pallas implementation of PushPlusLoss.forward.  Returns a scalar."""
    features = features.astype(jnp.float32)
    centers = centers.astype(jnp.float32)
    labels = labels.astype(jnp.int32)
    n, d = features.shape

    # --- O(N*D) glue, done once (not per column tile) -----------------------
    # F.normalize: x / max(||x||_2, 1e-12) == x * rsqrt(max(sum(x^2), 1e-24))
    sumsq = jnp.sum(features * features, axis=1, keepdims=True)
    f32n = features * lax.rsqrt(jnp.maximum(sumsq, 1e-24))       # (N, D) f32
    batch_centers = centers[labels, :]                           # (N, D)
    pos = 1.0 - jnp.sum(f32n * batch_centers, axis=1)            # (N,)   f32

    # --- tile selection ------------------------------------------------------
    kind = _device_kind()
    tm, tn, budget, scoped_default, resident_thr = _tile_config(kind)

    n128 = _round_up(max(n, 1), 128)
    d_align = 128 if "v5" in kind else 256      # feed the 256-wide MXU in whole K passes
    d_pad = _round_up(d, d_align)

    tn = min(tn, n128)
    tm = min(tm, n128)
    # v7x (and unknown): prefer >= 2 row tiles so the "parallel" i axis can
    # shard across both TensorCores.
    if ("v5" not in kind) and ("v6" not in kind) and n128 >= 256:
        tm = min(tm, _round_up(n128 // 2, 128))

    while True:
        n_pad = _round_up(n128, math.lcm(tm, tn))
        fj_resident = (n_pad * d_pad * 2) <= resident_thr
        vmem_est = _vmem_estimate(tm, tn, d_pad, n_pad, fj_resident)
        if vmem_est <= budget or tm <= 128:
            break
        tm = max(128, tm // 2)
    if fj_resident and vmem_est > budget:
        fj_resident = False
        vmem_est = _vmem_estimate(tm, tn, d_pad, n_pad, fj_resident)

    num_i = n_pad // tm
    num_j = n_pad // tn

    # --- pad operands; bf16 features for the MXU -----------------------------
    f_p = jnp.zeros((n_pad, d_pad), jnp.bfloat16)
    f_p = f_p.at[:n, :d].set(f32n.astype(jnp.bfloat16))
    lab_p = jnp.full((n_pad,), -1, jnp.int32).at[:n].set(labels)
    lab_row = lab_p.reshape(n_pad, 1)
    lab_col = lab_p.reshape(1, n_pad)
    neg_big = jnp.float32(-1e30)   # disables the hinge for any padded row/col
    rbias = jnp.full((n_pad, 1), neg_big, jnp.float32)
    rbias = rbias.at[:n, 0].set(pos + (float(margin) - 1.0))     # pos + margin - 1
    cbias = jnp.full((1, n_pad), neg_big, jnp.float32).at[0, :n].set(0.0)

    if fj_resident:
        fj_spec = pl.BlockSpec((n_pad, d_pad), lambda i, j: (0, 0))   # single HBM pass
    else:
        fj_spec = pl.BlockSpec((tn, d_pad), lambda i, j: (j, 0))      # streamed per j

    vmem_limit = (int(min(budget, vmem_est + (8 << 20)))
                  if vmem_est > scoped_default else None)

    loss_parts, valid_parts = pl.pallas_call(
        functools.partial(_push_plus_kernel, fj_resident=fj_resident),
        grid=(num_i, num_j),
        in_specs=[
            pl.BlockSpec((tm, d_pad), lambda i, j: (i, 0)),   # row feature tile
            fj_spec,                                          # col feature tile / resident
            pl.BlockSpec((tm, 1), lambda i, j: (i, 0)),       # row labels
            pl.BlockSpec((1, tn), lambda i, j: (0, j)),       # col labels
            pl.BlockSpec((tm, 1), lambda i, j: (i, 0)),       # row bias (pos + margin - 1)
            pl.BlockSpec((1, tn), lambda i, j: (0, j)),       # col bias (0 / -1e30)
        ],
        out_specs=(
            pl.BlockSpec((8, 128), lambda i, j: (i, 0)),
            pl.BlockSpec((8, 128), lambda i, j: (i, 0)),
        ),
        out_shape=(
            jax.ShapeDtypeStruct((num_i * 8, 128), jnp.float32),
            jax.ShapeDtypeStruct((num_i * 8, 128), jnp.float32),
        ),
        compiler_params=pltpu.CompilerParams(
            dimension_semantics=("parallel", "arbitrary"),
            vmem_limit_bytes=vmem_limit),
    )(f_p, f_p, lab_row, lab_col, rbias, cbias)

    loss_sum = jnp.sum(loss_parts)
    valid_sum = jnp.sum(valid_parts)
    # PyTorch returns 0 when no valid pairs exist.
    return jnp.where(valid_sum > 0.0,
                     loss_sum / jnp.maximum(valid_sum, 1.0),
                     jnp.float32(0.0))


def _reference(features, centers, labels, margin=0.7):
    """Pure-JAX f32 reference mirroring the PyTorch forward."""
    f = features / jnp.maximum(
        jnp.linalg.norm(features, axis=1, keepdims=True), 1e-12)
    bc = centers[labels, :]
    all_pairs = labels[:, None] != labels[None, :]
    pos = 1.0 - jnp.sum(f * bc, axis=1)
    neg = 1.0 - f @ f.T
    losses = margin + pos[:, None] - neg
    valid = (all_pairs & (losses > 0.0)).astype(jnp.float32)
    num_valid = jnp.sum(valid)
    return jnp.where(num_valid > 0,
                     jnp.sum(losses * valid) / jnp.maximum(num_valid, 1.0),
                     0.0)


if __name__ == "__main__":
    key = jax.random.PRNGKey(0)
    k_feat, k_cent, k_lab = jax.random.split(key, 3)

    # Small demo shapes consistent with the module: batch=8, feat dim=32, 4 classes.
    N, D, C = 8, 32, 4
    features = jax.random.normal(k_feat, (N, D), dtype=jnp.float32)
    centers = jax.random.normal(k_cent, (C, D), dtype=jnp.float32)
    centers = centers / jnp.linalg.norm(centers, axis=1, keepdims=True)
    labels = jax.random.randint(k_lab, (N,), 0, C, dtype=jnp.int32)

    out = jax.block_until_ready(push_plus_loss(features, centers, labels))
    ref = jax.block_until_ready(_reference(features, centers, labels))
    # bf16 MXU operands -> compare to the f32 reference with loosened tolerance.
    assert jnp.allclose(out, ref, atol=2e-2, rtol=2e-2), (out, ref)

    # A second, larger case exercising padding + the multi-tile grid path
    # (and the revisit-accumulation over the j axis).
    N2, D2, C2 = 300, 96, 7
    k_f2, k_c2, k_l2 = jax.random.split(jax.random.PRNGKey(1), 3)
    features2 = jax.random.normal(k_f2, (N2, D2), dtype=jnp.float32)
    centers2 = jax.random.normal(k_c2, (C2, D2), dtype=jnp.float32)
    centers2 = centers2 / jnp.linalg.norm(centers2, axis=1, keepdims=True)
    labels2 = jax.random.randint(k_l2, (N2,), 0, C2, dtype=jnp.int32)

    out2 = jax.block_until_ready(push_plus_loss(features2, centers2, labels2))
    ref2 = jax.block_until_ready(_reference(features2, centers2, labels2))
    assert jnp.allclose(out2, ref2, atol=2e-2, rtol=2e-2), (out2, ref2)

    print("KERNEL_OK")
</pallas_src>

<mosaic_0001>
module attributes {stable_mosaic.version = 11 : i64} {
  func.func @_push_plus_kernel(%arg0: i32, %arg1: i32, %arg2: memref<128x256xbf16, #tpu.memory_space<vmem>>, %arg3: memref<128x256xbf16, #tpu.memory_space<vmem>>, %arg4: memref<128x1xi32, #tpu.memory_space<vmem>>, %arg5: memref<1x128xi32, #tpu.memory_space<vmem>>, %arg6: memref<128x1xf32, #tpu.memory_space<vmem>>, %arg7: memref<1x128xf32, #tpu.memory_space<vmem>>, %arg8: memref<8x128xf32, #tpu.memory_space<vmem>>, %arg9: memref<8x128xf32, #tpu.memory_space<vmem>>) attributes {dimension_semantics = [#tpu.dimension_semantics<parallel>, #tpu.dimension_semantics<arbitrary>], iteration_bounds = array<i64: 1, 1>, scalar_prefetch = 0 : i64, scratch_operands = 0 : i64, tpu.core_type = #tpu.core_type<tc>, window_params = [{transform_indices = @transform_0, window_bounds = array<i64: 128, 256>}, {pipeline_mode = #tpu.pipeline_mode<synchronous>, transform_indices = @transform_1, window_bounds = array<i64: 128, 256>}, {transform_indices = @transform_2, window_bounds = array<i64: 128, 1>}, {transform_indices = @transform_3, window_bounds = array<i64: 1, 128>}, {transform_indices = @transform_4, window_bounds = array<i64: 128, 1>}, {transform_indices = @transform_5, window_bounds = array<i64: 1, 128>}, {transform_indices = @transform_6, window_bounds = array<i64: 8, 128>}, {transform_indices = @transform_7, window_bounds = array<i64: 8, 128>}]} {
    %c0_i32 = arith.constant 0 : i32
    %0 = arith.cmpi eq, %arg1, %c0_i32 : i32
    %1 = arith.extui %0 : i1 to i32
    %c0_i32_0 = arith.constant 0 : i32
    %2 = arith.cmpi ne, %1, %c0_i32_0 : i32
    scf.if %2 {
      %cst_25 = arith.constant 0.000000e+00 : f32
      %38 = vector.broadcast %cst_25 : f32 to vector<8x128xf32>
      %c0_26 = arith.constant 0 : index
      %c0_27 = arith.constant 0 : index
      %39 = vector.load %arg8[%c0_26, %c0_27] : memref<8x128xf32, #tpu.memory_space<vmem>>, vector<8x128xf32>
      tpu.vector_store %arg8[%c0_26, %c0_27], %38 {strides = array<i32>} : memref<8x128xf32, #tpu.memory_space<vmem>>, vector<8x128xf32>,
      %cst_28 = arith.constant 0.000000e+00 : f32
      %40 = vector.broadcast %cst_28 : f32 to vector<8x128xf32>
      %c0_29 = arith.constant 0 : index
      %c0_30 = arith.constant 0 : index
      %41 = vector.load %arg9[%c0_29, %c0_30] : memref<8x128xf32, #tpu.memory_space<vmem>>, vector<8x128xf32>
      tpu.vector_store %arg9[%c0_29, %c0_30], %40 {strides = array<i32>} : memref<8x128xf32, #tpu.memory_space<vmem>>, vector<8x128xf32>,
    } else {
    }
    %c128_i32 = arith.constant 128 : i32
    %3 = arith.muli %arg1, %c128_i32 : i32
    %4 = tpu.assume_multiple %3, 128 : i32
    %5 = arith.index_cast %4 : i32 to index
    %c0 = arith.constant 0 : index
    %6 = vector.load %arg3[%5, %c0] : memref<128x256xbf16, #tpu.memory_space<vmem>>, vector<128x256xbf16>
    %c0_1 = arith.constant 0 : index
    %c0_2 = arith.constant 0 : index
    %7 = vector.load %arg2[%c0_1, %c0_2] : memref<128x256xbf16, #tpu.memory_space<vmem>>, vector<128x256xbf16>
    %cst = arith.constant dense<0.000000e+00> : vector<128x128xf32>
    %8 = tpu.matmul %7, %6, %cst {dimension_numbers = #tpu.dot_dimension_numbers<[1], [1], [0], [0], [0, 0, 1, 0], [], []>} : vector<128x256xbf16>, vector<128x256xbf16>, vector<128x128xf32> -> vector<128x128xf32>
    %c0_3 = arith.constant 0 : index
    %c0_4 = arith.constant 0 : index
    %9 = vector.load %arg6[%c0_3, %c0_4] : memref<128x1xf32, #tpu.memory_space<vmem>>, vector<128x1xf32>
    %10 = vector.broadcast %9 : vector<128x1xf32> to vector<128x128xf32>
    %11 = arith.addf %8, %10 : vector<128x128xf32>
    %c0_5 = arith.constant 0 : index
    %c0_6 = arith.constant 0 : index
    %12 = vector.load %arg7[%c0_5, %c0_6] : memref<1x128xf32, #tpu.memory_space<vmem>>, vector<1x128xf32>
    %13 = vector.broadcast %12 : vector<1x128xf32> to vector<128x128xf32>
    %14 = arith.addf %11, %13 : vector<128x128xf32>
    %c0_7 = arith.constant 0 : index
    %c0_8 = arith.constant 0 : index
    %15 = vector.load %arg4[%c0_7, %c0_8] : memref<128x1xi32, #tpu.memory_space<vmem>>, vector<128x1xi32>
    %c0_9 = arith.constant 0 : index
    %c0_10 = arith.constant 0 : index
    %16 = vector.load %arg5[%c0_9, %c0_10] : memref<1x128xi32, #tpu.memory_space<vmem>>, vector<1x128xi32>
    %17 = vector.broadcast %15 : vector<128x1xi32> to vector<128x128xi32>
    %18 = vector.broadcast %16 : vector<1x128xi32> to vector<128x128xi32>
    %19 = arith.cmpi ne, %17, %18 : vector<128x128xi32>
    %cst_11 = arith.constant 0.000000e+00 : f32
    %20 = vector.broadcast %cst_11 : f32 to vector<128x128xf32>
    %21 = arith.cmpf ogt, %14, %20 : vector<128x128xf32>
    %22 = arith.andi %19, %21 : vector<128x128xi1>
    %c0_12 = arith.constant 0 : index
    %c0_13 = arith.constant 0 : index
    %23 = vector.load %arg8[%c0_12, %c0_13] : memref<8x128xf32, #tpu.memory_space<vmem>>, vector<8x128xf32>
    %cst_14 = arith.constant 0.000000e+00 : f32
    %24 = vector.broadcast %cst_14 : f32 to vector<128x128xf32>
    %25 = arith.select %22, %14, %24 : vector<128x128xi1>, vector<128x128xf32>
    %26 = vector.shape_cast %25 : vector<128x128xf32> to vector<16x8x128xf32>
    %cst_15 = arith.constant dense<0.000000e+00> : vector<8x128xf32>
    %27 = vector.multi_reduction <add>, %26, %cst_15 [0] : vector<16x8x128xf32> to vector<8x128xf32>
    %28 = arith.addf %23, %27 : vector<8x128xf32>
    %c0_16 = arith.constant 0 : index
    %c0_17 = arith.constant 0 : index
    %29 = vector.load %arg8[%c0_16, %c0_17] : memref<8x128xf32, #tpu.memory_space<vmem>>, vector<8x128xf32>
    tpu.vector_store %arg8[%c0_16, %c0_17], %28 {strides = array<i32>} : memref<8x128xf32, #tpu.memory_space<vmem>>, vector<8x128xf32>,
    %c0_18 = arith.constant 0 : index
    %c0_19 = arith.constant 0 : index
    %30 = vector.load %arg9[%c0_18, %c0_19] : memref<8x128xf32, #tpu.memory_space<vmem>>, vector<8x128xf32>
    %cst_20 = arith.constant 1.000000e+00 : f32
    %cst_21 = arith.constant 0.000000e+00 : f32
    %31 = vector.broadcast %cst_20 : f32 to vector<128x128xf32>
    %32 = vector.broadcast %cst_21 : f32 to vector<128x128xf32>
    %33 = arith.select %22, %31, %32 : vector<128x128xi1>, vector<128x128xf32>
    %34 = vector.shape_cast %33 : vector<128x128xf32> to vector<16x8x128xf32>
    %cst_22 = arith.constant dense<0.000000e+00> : vector<8x128xf32>
    %35 = vector.multi_reduction <add>, %34, %cst_22 [0] : vector<16x8x128xf32> to vector<8x128xf32>
    %36 = arith.addf %30, %35 : vector<8x128xf32>
    %c0_23 = arith.constant 0 : index
    %c0_24 = arith.constant 0 : index
    %37 = vector.load %arg9[%c0_23, %c0_24] : memref<8x128xf32, #tpu.memory_space<vmem>>, vector<8x128xf32>
    tpu.vector_store %arg9[%c0_23, %c0_24], %36 {strides = array<i32>} : memref<8x128xf32, #tpu.memory_space<vmem>>, vector<8x128xf32>,
    return
  }
  func.func @transform_0(%arg0: i32, %arg1: i32) -> (i32, i32) {
    %c0_i32 = arith.constant 0 : i32
    %c0_i32_0 = arith.constant 0 : i32
    return %arg0, %c0_i32 : i32, i32
  }
  func.func @transform_1(%arg0: i32, %arg1: i32) -> (i32, i32) {
    %c0_i32 = arith.constant 0 : i32
    %c0_i32_0 = arith.constant 0 : i32
    %c0_i32_1 = arith.constant 0 : i32
    return %c0_i32, %c0_i32_0 : i32, i32
  }
  func.func @transform_2(%arg0: i32, %arg1: i32) -> (i32, i32) {
    %c0_i32 = arith.constant 0 : i32
    %c0_i32_0 = arith.constant 0 : i32
    return %arg0, %c0_i32 : i32, i32
  }
  func.func @transform_3(%arg0: i32, %arg1: i32) -> (i32, i32) {
    %c0_i32 = arith.constant 0 : i32
    %c0_i32_0 = arith.constant 0 : i32
    return %c0_i32, %arg1 : i32, i32
  }
  func.func @transform_4(%arg0: i32, %arg1: i32) -> (i32, i32) {
    %c0_i32 = arith.constant 0 : i32
    %c0_i32_0 = arith.constant 0 : i32
    return %arg0, %c0_i32 : i32, i32
  }
  func.func @transform_5(%arg0: i32, %arg1: i32) -> (i32, i32) {
    %c0_i32 = arith.constant 0 : i32
    %c0_i32_0 = arith.constant 0 : i32
    return %c0_i32, %arg1 : i32, i32
  }
  func.func @transform_6(%arg0: i32, %arg1: i32) -> (i32, i32) {
    %c0_i32 = arith.constant 0 : i32
    %c0_i32_0 = arith.constant 0 : i32
    return %arg0, %c0_i32 : i32, i32
  }
  func.func @transform_7(%arg0: i32, %arg1: i32) -> (i32, i32) {
    %c0_i32 = arith.constant 0 : i32
    %c0_i32_0 = arith.constant 0 : i32
    return %arg0, %c0_i32 : i32, i32
  }
}

</mosaic_0001>

<llo_original>
// kernel: tpu_custom_call.1
$region0: #{tpu_custom_call.1}
  #allocation0 [shape = 'u32[]', space=smem, size = 0x4, offset = 0x4, fixed_abs, tag = 'smem constant byte address 0x4 - core index']
  #allocation1 [shape = 'u32[144,128]{1,0:T(1,128)}', space=vmem, size = 0x12000, scoped, tag = 'internal scratch']
  %s0 = inlined_call_operand.vmem [shape: bf16[128,256], index: 0, kind: input, shape index: {}]
  %s1 = inlined_call_operand.vmem [shape: bf16[128,256], index: 1, kind: input, shape index: {}]
  %s2 = inlined_call_operand.vmem [shape: s32[128,1], index: 2, kind: input, shape index: {}]
  %s3 = inlined_call_operand.vmem [shape: s32[1,128], index: 3, kind: input, shape index: {}]
  %s4 = inlined_call_operand.vmem [shape: f32[128,1], index: 4, kind: input, shape index: {}]
  %s5 = inlined_call_operand.vmem [shape: f32[1,128], index: 5, kind: input, shape index: {}]
  %s6 = inlined_call_operand.hbm [shape: f32[8,128], index: 6, kind: output, shape index: {0}]
  %s7 = inlined_call_operand.hbm [shape: f32[8,128], index: 7, kind: output, shape index: {1}]
  %8 = xla_tuple %s6, %s7
  %s9 = sld [smem:[#allocation0]]
  $region46: #{tpu_custom_call.1} parent=0
    _
  %s11 = ssub.s32 1, %s9
  %s12 = scalar_select 0, %s11, %s9
  $region1: #{tpu_custom_call.1} parent=0
    #allocation2 [shape = 'u8[4096]{0}', space=vmem, size = 0x1000, scoped, tag = 'output window, operand 0, single buffered']
    #allocation3 [shape = 's32[1]{0}', space=sflag, size = 0x4, scoped, tag = 'scoped memory for tpu_custom_call.1']
    #allocation4 [shape = 'u8[4096]{0}', space=vmem, size = 0x1000, scoped, tag = 'output window, operand 1, single buffered']
    #allocation5 [shape = 's32[1]{0}', space=sflag, size = 0x4, scoped, tag = 'scoped memory for tpu_custom_call.1']
    %13 = vsyncpa [#allocation3], 0
    %14 = vsyncpa [#allocation5], 0
    // Predicated region
    $region2: #{tpu_custom_call.1} parent=1 // pred_check
      _
    $region3: #{tpu_custom_call.1} parent=1 // pred_check_branch
      %16 = sbr.rel (0) target = $region5
    $region4: #{tpu_custom_call.1} parent=1 // pred_region
      _
    $region5: #{tpu_custom_call.1} parent=1 // pred_fallthru
      _
    // Predicated region
    $region6: #{tpu_custom_call.1} parent=1 // pred_check
      _
    $region7: #{tpu_custom_call.1} parent=1 // pred_check_branch
      %18 = sbr.rel (0) target = $region9
    $region8: #{tpu_custom_call.1} parent=1 // pred_region
      _
    $region9: #{tpu_custom_call.1} parent=1 // pred_fallthru
      _
    // Predicated region
    $region10: #{tpu_custom_call.1} parent=1 // pred_check
      _
    $region11: #{tpu_custom_call.1} parent=1 // pred_check_branch
      %20 = sbr.rel (0) target = $region13
    $region12: #{tpu_custom_call.1} parent=1 // pred_region
      _
    $region13: #{tpu_custom_call.1} parent=1 // pred_fallthru
      _
    // Predicated region
    $region14: #{tpu_custom_call.1} parent=1 // pred_check
      _
    $region15: #{tpu_custom_call.1} parent=1 // pred_check_branch
      %22 = sbr.rel (0) target = $region17
    $region16: #{tpu_custom_call.1} parent=1 // pred_region
      _
    $region17: #{tpu_custom_call.1} parent=1 // pred_fallthru
      _
    // Predicated region
    $region18: #{tpu_custom_call.1} parent=1 // pred_check
      _
    $region19: #{tpu_custom_call.1} parent=1 // pred_check_branch
      %24 = sbr.rel (0) target = $region21
    $region20: #{tpu_custom_call.1} parent=1 // pred_region
      _
    $region21: #{tpu_custom_call.1} parent=1 // pred_fallthru
      _
    // Predicated region
    $region22: #{tpu_custom_call.1} parent=1 // pred_check
      _
    $region23: #{tpu_custom_call.1} parent=1 // pred_check_branch
      %26 = sbr.rel (0) target = $region25
    $region24: #{tpu_custom_call.1} parent=1 // pred_region
      _
    $region25: #{tpu_custom_call.1} parent=1 // pred_fallthru
      _
    %p28 = scmp.eq.s32.totalorder 0, 0
    // Predicated region
    $region26: #{tpu_custom_call.1} parent=1 // pred_check
      %p29 = pneg %p28
    $region27: #{tpu_custom_call.1} parent=1 // pred_check_branch
      %31 = sbr.rel (%p29) target = $region29
    $region28: #{tpu_custom_call.1} parent=1 // pred_region
      %32 = vst [vmem:[#allocation2] sm:$0xff] 0.0
      %33 = vst [vmem:[#allocation4] sm:$0xff] 0.0
    $region29: #{tpu_custom_call.1} parent=1 // pred_fallthru
      _
    %s34 = smul.u32 0, 128
    %s35 = sshra.s32 %s34, 3
    %s36 = sand.u32 %s34, 7
    %s37 = smul.u32 %s35, 2
    %s38 = smul.addr %s37, 4
    %s39 = scalar_lea.vmem %s1, %s38
    %v40 = vld [vmem:[%s39] sm:$0xff]
    %v41 = vld [vmem:[%s39 + $0x8] sm:$0xff]
    %v42 = vld [vmem:[%s39 + $0x10] sm:$0xff]
    %v43 = vld [vmem:[%s39 + $0x18] sm:$0xff]
    %v44 = vld [vmem:[%s39 + $0x20] sm:$0xff]
    %v45 = vld [vmem:[%s39 + $0x28] sm:$0xff]
    %v46 = vld [vmem:[%s39 + $0x30] sm:$0xff]
    %v47 = vld [vmem:[%s39 + $0x38] sm:$0xff]
    %v48 = vld [vmem:[%s39 + $0x40] sm:$0xff]
    %v49 = vld [vmem:[%s39 + $0x48] sm:$0xff]
    %v50 = vld [vmem:[%s39 + $0x50] sm:$0xff]
    %v51 = vld [vmem:[%s39 + $0x58] sm:$0xff]
    %v52 = vld [vmem:[%s39 + $0x60] sm:$0xff]
    %v53 = vld [vmem:[%s39 + $0x68] sm:$0xff]
    %v54 = vld [vmem:[%s39 + $0x70] sm:$0xff]
    %v55 = vld [vmem:[%s39 + $0x78] sm:$0xff]
    %v56 = vld [vmem:[%s0] sm:$0xff]
    %v57 = vld [vmem:[%s0 + $0x8] sm:$0xff]
    %v58 = vld [vmem:[%s0 + $0x10] sm:$0xff]
    %v59 = vld [vmem:[%s0 + $0x18] sm:$0xff]
    %v60 = vld [vmem:[%s0 + $0x20] sm:$0xff]
    %v61 = vld [vmem:[%s0 + $0x28] sm:$0xff]
    %v62 = vld [vmem:[%s0 + $0x30] sm:$0xff]
    %v63 = vld [vmem:[%s0 + $0x38] sm:$0xff]
    %v64 = vld [vmem:[%s0 + $0x40] sm:$0xff]
    %v65 = vld [vmem:[%s0 + $0x48] sm:$0xff]
    %v66 = vld [vmem:[%s0 + $0x50] sm:$0xff]
    %v67 = vld [vmem:[%s0 + $0x58] sm:$0xff]
    %v68 = vld [vmem:[%s0 + $0x60] sm:$0xff]
    %v69 = vld [vmem:[%s0 + $0x68] sm:$0xff]
    %v70 = vld [vmem:[%s0 + $0x70] sm:$0xff]
    %v71 = vld [vmem:[%s0 + $0x78] sm:$0xff]
    %v72 = vld [vmem:[%s4] sm:$0xff]
    %v73 = vld [vmem:[%s4 + $0x8] sm:$0xff]
    %v74 = vld [vmem:[%s4 + $0x10] sm:$0xff]
    %v75 = vld [vmem:[%s4 + $0x18] sm:$0xff]
    %v76 = vld [vmem:[%s4 + $0x20] sm:$0xff]
    %v77 = vld [vmem:[%s4 + $0x28] sm:$0xff]
    %v78 = vld [vmem:[%s4 + $0x30] sm:$0xff]
    %v79 = vld [vmem:[%s4 + $0x38] sm:$0xff]
    %v80 = vld [vmem:[%s4 + $0x40] sm:$0xff]
    %v81 = vld [vmem:[%s4 + $0x48] sm:$0xff]
    %v82 = vld [vmem:[%s4 + $0x50] sm:$0xff]
    %v83 = vld [vmem:[%s4 + $0x58] sm:$0xff]
    %v84 = vld [vmem:[%s4 + $0x60] sm:$0xff]
    %v85 = vld [vmem:[%s4 + $0x68] sm:$0xff]
    %v86 = vld [vmem:[%s4 + $0x70] sm:$0xff]
    %v87 = vld [vmem:[%s4 + $0x78] sm:$0xff]
    %89 = vset.pattern.permute.xlu0 0
    %90 = vperm.xlu0 %89, %v72
    %v91 = vpop.permute.xlu0 %90
    %94 = vset.pattern.permute.xlu0 0
    %95 = vperm.xlu0 %94, %v73
    %v96 = vpop.permute.xlu0 %95
    %99 = vset.pattern.permute.xlu0 0
    %100 = vperm.xlu0 %99, %v74
    %v101 = vpop.permute.xlu0 %100
    %104 = vset.pattern.permute.xlu0 0
    %105 = vperm.xlu0 %104, %v75
    %v106 = vpop.permute.xlu0 %105
    %109 = vset.pattern.permute.xlu0 0
    %110 = vperm.xlu0 %109, %v76
    %v111 = vpop.permute.xlu0 %110
    %114 = vset.pattern.permute.xlu0 0
    %115 = vperm.xlu0 %114, %v77
    %v116 = vpop.permute.xlu0 %115
    %119 = vset.pattern.permute.xlu0 0
    %120 = vperm.xlu0 %119, %v78
    %v121 = vpop.permute.xlu0 %120
    %124 = vset.pattern.permute.xlu0 0
    %125 = vperm.xlu0 %124, %v79
    %v126 = vpop.permute.xlu0 %125
    %129 = vset.pattern.permute.xlu0 0
    %130 = vperm.xlu0 %129, %v80
    %v131 = vpop.permute.xlu0 %130
    %134 = vset.pattern.permute.xlu0 0
    %135 = vperm.xlu0 %134, %v81
    %v136 = vpop.permute.xlu0 %135
    %139 = vset.pattern.permute.xlu0 0
    %140 = vperm.xlu0 %139, %v82
    %v141 = vpop.permute.xlu0 %140
    %144 = vset.pattern.permute.xlu0 0
    %145 = vperm.xlu0 %144, %v83
    %v146 = vpop.permute.xlu0 %145
    %149 = vset.pattern.permute.xlu0 0
    %150 = vperm.xlu0 %149, %v84
    %v151 = vpop.permute.xlu0 %150
    %154 = vset.pattern.permute.xlu0 0
    %155 = vperm.xlu0 %154, %v85
    %v156 = vpop.permute.xlu0 %155
    %159 = vset.pattern.permute.xlu0 0
    %160 = vperm.xlu0 %159, %v86
    %v161 = vpop.permute.xlu0 %160
    %164 = vset.pattern.permute.xlu0 0
    %165 = vperm.xlu0 %164, %v87
    %v166 = vpop.permute.xlu0 %165
    %v184 = vunpack.c.l.b16 %v56
    %v185 = vunpack.c.h.b16 %v56
    %v186 = vunpack.c.l.b16 %v57
    %v187 = vunpack.c.h.b16 %v57
    %v188 = vunpack.c.l.b16 %v58
    %v189 = vunpack.c.h.b16 %v58
    %v190 = vunpack.c.l.b16 %v59
    %v191 = vunpack.c.h.b16 %v59
    %v192 = vunpack.c.l.b16 %v60
    %v193 = vunpack.c.h.b16 %v60
    %v194 = vunpack.c.l.b16 %v61
    %v195 = vunpack.c.h.b16 %v61
    %v196 = vunpack.c.l.b16 %v62
    %v197 = vunpack.c.h.b16 %v62
    %v198 = vunpack.c.l.b16 %v63
    %v199 = vunpack.c.h.b16 %v63
    %v200 = vunpack.c.l.b16 %v64
    %v201 = vunpack.c.h.b16 %v64
    %v202 = vunpack.c.l.b16 %v65
    %v203 = vunpack.c.h.b16 %v65
    %v204 = vunpack.c.l.b16 %v66
    %v205 = vunpack.c.h.b16 %v66
    %v206 = vunpack.c.l.b16 %v67
    %v207 = vunpack.c.h.b16 %v67
    %v208 = vunpack.c.l.b16 %v68
    %v209 = vunpack.c.h.b16 %v68
    %v210 = vunpack.c.l.b16 %v69
    %v211 = vunpack.c.h.b16 %v69
    %v212 = vunpack.c.l.b16 %v70
    %v213 = vunpack.c.h.b16 %v70
    %v214 = vunpack.c.l.b16 %v71
    %v215 = vunpack.c.h.b16 %v71
    %v216 = vpack.c.b16 %v186, %v184
    %v217 = vpack.c.b16 %v187, %v185
    %v218 = vpack.c.b16 %v190, %v188
    %v219 = vpack.c.b16 %v191, %v189
    %v220 = vpack.c.b16 %v194, %v192
    %v221 = vpack.c.b16 %v195, %v193
    %v222 = vpack.c.b16 %v198, %v196
    %v223 = vpack.c.b16 %v199, %v197
    %v224 = vpack.c.b16 %v202, %v200
    %v225 = vpack.c.b16 %v203, %v201
    %v226 = vpack.c.b16 %v206, %v204
    %v227 = vpack.c.b16 %v207, %v205
    %v228 = vpack.c.b16 %v210, %v208
    %v229 = vpack.c.b16 %v211, %v209
    %v230 = vpack.c.b16 %v214, %v212
    %v231 = vpack.c.b16 %v215, %v213
    %v264 = vunpack.c.l.b16 %v40
    %v265 = vunpack.c.h.b16 %v40
    %v266 = vunpack.c.l.b16 %v41
    %v267 = vunpack.c.h.b16 %v41
    %v268 = vunpack.c.l.b16 %v42
    %v269 = vunpack.c.h.b16 %v42
    %v270 = vunpack.c.l.b16 %v43
    %v271 = vunpack.c.h.b16 %v43
    %v272 = vunpack.c.l.b16 %v44
    %v273 = vunpack.c.h.b16 %v44
    %v274 = vunpack.c.l.b16 %v45
    %v275 = vunpack.c.h.b16 %v45
    %v276 = vunpack.c.l.b16 %v46
    %v277 = vunpack.c.h.b16 %v46
    %v278 = vunpack.c.l.b16 %v47
    %v279 = vunpack.c.h.b16 %v47
    %v280 = vunpack.c.l.b16 %v48
    %v281 = vunpack.c.h.b16 %v48
    %v282 = vunpack.c.l.b16 %v49
    %v283 = vunpack.c.h.b16 %v49
    %v284 = vunpack.c.l.b16 %v50
    %v285 = vunpack.c.h.b16 %v50
    %v286 = vunpack.c.l.b16 %v51
    %v287 = vunpack.c.h.b16 %v51
    %v288 = vunpack.c.l.b16 %v52
    %v289 = vunpack.c.h.b16 %v52
    %v290 = vunpack.c.l.b16 %v53
    %v291 = vunpack.c.h.b16 %v53
    %v292 = vunpack.c.l.b16 %v54
    %v293 = vunpack.c.h.b16 %v54
    %v294 = vunpack.c.l.b16 %v55
    %v295 = vunpack.c.h.b16 %v55
    %v296 = vpack.c.b16 %v266, %v264
    %v297 = vpack.c.b16 %v267, %v265
    %v298 = vpack.c.b16 %v270, %v268
    %v299 = vpack.c.b16 %v271, %v269
    %v300 = vpack.c.b16 %v274, %v272
    %v301 = vpack.c.b16 %v275, %v273
    %v302 = vpack.c.b16 %v278, %v276
    %v303 = vpack.c.b16 %v279, %v277
    %v304 = vpack.c.b16 %v282, %v280
    %v305 = vpack.c.b16 %v283, %v281
    %v306 = vpack.c.b16 %v286, %v284
    %v307 = vpack.c.b16 %v287, %v285
    %v308 = vpack.c.b16 %v290, %v288
    %v309 = vpack.c.b16 %v291, %v289
    %v310 = vpack.c.b16 %v294, %v292
    %v311 = vpack.c.b16 %v295, %v293
    %328 = vmatprep.subr.bf16.mxu0 %v297
    %329 = vmatpush1.bf16.xpose.msra.mxu0 %v296
    %330 = vmatprep.subr.bf16.mxu0 %v299
    %331 = vmatpush1.bf16.xpose.msra.mxu0 %v298
    %332 = vmatprep.subr.bf16.mxu0 %v301
    %333 = vmatpush1.bf16.xpose.msra.mxu0 %v300
    %334 = vmatprep.subr.bf16.mxu0 %v303
    %335 = vmatpush1.bf16.xpose.msra.mxu0 %v302
    %336 = vmatprep.subr.bf16.mxu0 %v305
    %337 = vmatpush1.bf16.xpose.msra.mxu0 %v304
    %338 = vmatprep.subr.bf16.mxu0 %v307
    %339 = vmatpush1.bf16.xpose.msra.mxu0 %v306
    %340 = vmatprep.subr.bf16.mxu0 %v309
    %341 = vmatpush1.bf16.xpose.msra.mxu0 %v308
    %342 = vmatprep.subr.bf16.mxu0 %v311
    %343 = vmatpush1.bf16.xpose.msra.mxu0 %v310
    %344 = vmatprep.subr.bf16.mxu0 0
    %345 = vmatpush1.bf16.xpose.msra.mxu0 0
    %346 = vmatprep.subr.bf16.mxu0 0
    %347 = vmatpush1.bf16.xpose.msra.mxu0 0
    %348 = vmatprep.subr.bf16.mxu0 0
    %349 = vmatpush1.bf16.xpose.msra.mxu0 0
    %350 = vmatprep.subr.bf16.mxu0 0
    %351 = vmatpush1.bf16.xpose.msra.mxu0 0
    %352 = vmatprep.subr.bf16.mxu0 0
    %353 = vmatpush1.bf16.xpose.msra.mxu0 0
    %354 = vmatprep.subr.bf16.mxu0 0
    %355 = vmatpush1.bf16.xpose.msra.mxu0 0
    %356 = vmatprep.subr.bf16.mxu0 0
    %357 = vmatpush1.bf16.xpose.msra.mxu0 0
    %358 = vmatprep.subr.bf16.mxu0 0
    %359 = vmatpush1.bf16.xpose.msra.mxu0 0
    %360 = vmatprep.mubr.bf16.mxu0 %v217
    %361 = vmatmul.mubr.bf16.gmra.mrb[0].mxu0 %v216
    %v362 = vpop.f32.mrb[0].mxu0
    %v363 = vadd.f32 %v91, %v362
    %v364 = vpop.f32.mrb[0].mxu0
    %v365 = vpop.f32.mrb[0].mxu0
    %v366 = vadd.f32 %v96, %v365
    %v367 = vpop.f32.mrb[0].mxu0
    %368 = vmatprep.mubr.bf16.mxu0 %v219
    %369 = vmatmul.mubr.bf16.gmra.mrb[0].mxu0 %v218
    %v370 = vpop.f32.mrb[0].mxu0
    %v371 = vadd.f32 %v101, %v370
    %v372 = vpop.f32.mrb[0].mxu0
    %v373 = vpop.f32.mrb[0].mxu0
    %v374 = vadd.f32 %v106, %v373
    %v375 = vpop.f32.mrb[0].mxu0
    %376 = vmatprep.mubr.bf16.mxu0 %v221
    %377 = vmatmul.mubr.bf16.gmra.mrb[0].mxu0 %v220
    %v378 = vpop.f32.mrb[0].mxu0
    %v379 = vadd.f32 %v111, %v378
    %v380 = vpop.f32.mrb[0].mxu0
    %v381 = vpop.f32.mrb[0].mxu0
    %v382 = vadd.f32 %v116, %v381
    %v383 = vpop.f32.mrb[0].mxu0
    %384 = vmatprep.mubr.bf16.mxu0 %v223
    %385 = vmatmul.mubr.bf16.gmra.mrb[0].mxu0 %v222
    %v386 = vpop.f32.mrb[0].mxu0
    %v387 = vadd.f32 %v121, %v386
    %v388 = vpop.f32.mrb[0].mxu0
    %v389 = vpop.f32.mrb[0].mxu0
    %v390 = vadd.f32 %v126, %v389
    %v391 = vpop.f32.mrb[0].mxu0
    %392 = vmatprep.mubr.bf16.mxu0 %v225
    %393 = vmatmul.mubr.bf16.gmra.mrb[0].mxu0 %v224
    %v394 = vpop.f32.mrb[0].mxu0
    %v395 = vadd.f32 %v131, %v394
    %v396 = vpop.f32.mrb[0].mxu0
    %v397 = vpop.f32.mrb[0].mxu0
    %v398 = vadd.f32 %v136, %v397
    %v399 = vpop.f32.mrb[0].mxu0
    %400 = vmatprep.mubr.bf16.mxu0 %v227
    %401 = vmatmul.mubr.bf16.gmra.mrb[0].mxu0 %v226
    %v402 = vpop.f32.mrb[0].mxu0
    %v403 = vadd.f32 %v141, %v402
    %v404 = vpop.f32.mrb[0].mxu0
    %v405 = vpop.f32.mrb[0].mxu0
    %v406 = vadd.f32 %v146, %v405
    %v407 = vpop.f32.mrb[0].mxu0
    %408 = vmatprep.mubr.bf16.mxu0 %v229
    %409 = vmatmul.mubr.bf16.gmra.mrb[0].mxu0 %v228
    %v410 = vpop.f32.mrb[0].mxu0
    %v411 = vadd.f32 %v151, %v410
    %v412 = vpop.f32.mrb[0].mxu0
    %v413 = vpop.f32.mrb[0].mxu0
    %v414 = vadd.f32 %v156, %v413
    %v415 = vpop.f32.mrb[0].mxu0
    %416 = vmatprep.mubr.bf16.mxu0 %v231
    %417 = vmatmul.mubr.bf16.gmra.mrb[0].mxu0 %v230
    %v418 = vpop.f32.mrb[0].mxu0
    %v419 = vadd.f32 %v161, %v418
    %v420 = vpop.f32.mrb[0].mxu0
    %v421 = vpop.f32.mrb[0].mxu0
    %v422 = vadd.f32 %v166, %v421
    %v423 = vpop.f32.mrb[0].mxu0
    %424 = vdwg.mxu0
    %v425 = vld [vmem:[%s5] sm:$0x1]
    %v427 = vlaneseq
    %v428 = vshrl.u32 %v427, 7
    %v429 = vsub.s32 0, %v428
    %v430 = vrot.slane %v425, %v429
    %v432 = vadd.f32 %v363, %v430
    %v433 = vadd.f32 %v366, %v430
    %v434 = vadd.f32 %v371, %v430
    %v435 = vadd.f32 %v374, %v430
    %v436 = vadd.f32 %v379, %v430
    %v437 = vadd.f32 %v382, %v430
    %v438 = vadd.f32 %v387, %v430
    %v439 = vadd.f32 %v390, %v430
    %v440 = vadd.f32 %v395, %v430
    %v441 = vadd.f32 %v398, %v430
    %v442 = vadd.f32 %v403, %v430
    %v443 = vadd.f32 %v406, %v430
    %v444 = vadd.f32 %v411, %v430
    %v445 = vadd.f32 %v414, %v430
    %v446 = vadd.f32 %v419, %v430
    %v447 = vadd.f32 %v422, %v430
    %v448 = vld [vmem:[%s2] sm:$0xff]
    %v449 = vld [vmem:[%s2 + $0x8] sm:$0xff]
    %v450 = vld [vmem:[%s2 + $0x10] sm:$0xff]
    %v451 = vld [vmem:[%s2 + $0x18] sm:$0xff]
    %v452 = vld [vmem:[%s2 + $0x20] sm:$0xff]
    %v453 = vld [vmem:[%s2 + $0x28] sm:$0xff]
    %v454 = vld [vmem:[%s2 + $0x30] sm:$0xff]
    %v455 = vld [vmem:[%s2 + $0x38] sm:$0xff]
    %v456 = vld [vmem:[%s2 + $0x40] sm:$0xff]
    %v457 = vld [vmem:[%s2 + $0x48] sm:$0xff]
    %v458 = vld [vmem:[%s2 + $0x50] sm:$0xff]
    %v459 = vld [vmem:[%s2 + $0x58] sm:$0xff]
    %v460 = vld [vmem:[%s2 + $0x60] sm:$0xff]
    %v461 = vld [vmem:[%s2 + $0x68] sm:$0xff]
    %v462 = vld [vmem:[%s2 + $0x70] sm:$0xff]
    %v463 = vld [vmem:[%s2 + $0x78] sm:$0xff]
    %v464 = vld [vmem:[%s3] sm:$0x1]
    %465 = vset.pattern.permute.xlu0 0
    %466 = vperm.xlu0 %465, %v448
    %v467 = vpop.permute.xlu0 %466
    %468 = vset.pattern.permute.xlu0 0
    %469 = vperm.xlu0 %468, %v449
    %v470 = vpop.permute.xlu0 %469
    %471 = vset.pattern.permute.xlu0 0
    %472 = vperm.xlu0 %471, %v450
    %v473 = vpop.permute.xlu0 %472
    %474 = vset.pattern.permute.xlu0 0
    %475 = vperm.xlu0 %474, %v451
    %v476 = vpop.permute.xlu0 %475
    %477 = vset.pattern.permute.xlu0 0
    %478 = vperm.xlu0 %477, %v452
    %v479 = vpop.permute.xlu0 %478
    %480 = vset.pattern.permute.xlu0 0
    %481 = vperm.xlu0 %480, %v453
    %v482 = vpop.permute.xlu0 %481
    %483 = vset.pattern.permute.xlu0 0
    %484 = vperm.xlu0 %483, %v454
    %v485 = vpop.permute.xlu0 %484
    %486 = vset.pattern.permute.xlu0 0
    %487 = vperm.xlu0 %486, %v455
    %v488 = vpop.permute.xlu0 %487
    %489 = vset.pattern.permute.xlu0 0
    %490 = vperm.xlu0 %489, %v456
    %v491 = vpop.permute.xlu0 %490
    %492 = vset.pattern.permute.xlu0 0
    %493 = vperm.xlu0 %492, %v457
    %v494 = vpop.permute.xlu0 %493
    %495 = vset.pattern.permute.xlu0 0
    %496 = vperm.xlu0 %495, %v458
    %v497 = vpop.permute.xlu0 %496
    %498 = vset.pattern.permute.xlu0 0
    %499 = vperm.xlu0 %498, %v459
    %v500 = vpop.permute.xlu0 %499
    %501 = vset.pattern.permute.xlu0 0
    %502 = vperm.xlu0 %501, %v460
    %v503 = vpop.permute.xlu0 %502
    %504 = vset.pattern.permute.xlu0 0
    %505 = vperm.xlu0 %504, %v461
    %v506 = vpop.permute.xlu0 %505
    %507 = vset.pattern.permute.xlu0 0
    %508 = vperm.xlu0 %507, %v462
    %v509 = vpop.permute.xlu0 %508
    %510 = vset.pattern.permute.xlu0 0
    %511 = vperm.xlu0 %510, %v463
    %v512 = vpop.permute.xlu0 %511
    %v513 = vlaneseq
    %v514 = vshrl.u32 %v513, 7
    %v515 = vsub.s32 0, %v514
    %v516 = vrot.slane %v464, %v515
    %vm517 = vcmp.ne.s32.totalorder %v467, %v516
    %vm518 = vcmp.ne.s32.totalorder %v470, %v516
    %vm519 = vcmp.ne.s32.totalorder %v473, %v516
    %vm520 = vcmp.ne.s32.totalorder %v476, %v516
    %vm521 = vcmp.ne.s32.totalorder %v479, %v516
    %vm522 = vcmp.ne.s32.totalorder %v482, %v516
    %vm523 = vcmp.ne.s32.totalorder %v485, %v516
    %vm524 = vcmp.ne.s32.totalorder %v488, %v516
    %vm525 = vcmp.ne.s32.totalorder %v491, %v516
    %vm526 = vcmp.ne.s32.totalorder %v494, %v516
    %vm527 = vcmp.ne.s32.totalorder %v497, %v516
    %vm528 = vcmp.ne.s32.totalorder %v500, %v516
    %vm529 = vcmp.ne.s32.totalorder %v503, %v516
    %vm530 = vcmp.ne.s32.totalorder %v506, %v516
    %vm531 = vcmp.ne.s32.totalorder %v509, %v516
    %vm532 = vcmp.ne.s32.totalorder %v512, %v516
    %vm533 = vcmp.gt.f32.partialorder %v432, 0.0
    %vm534 = vcmp.gt.f32.partialorder %v433, 0.0
    %vm535 = vcmp.gt.f32.partialorder %v434, 0.0
    %vm536 = vcmp.gt.f32.partialorder %v435, 0.0
    %vm537 = vcmp.gt.f32.partialorder %v436, 0.0
    %vm538 = vcmp.gt.f32.partialorder %v437, 0.0
    %vm539 = vcmp.gt.f32.partialorder %v438, 0.0
    %vm540 = vcmp.gt.f32.partialorder %v439, 0.0
    %vm541 = vcmp.gt.f32.partialorder %v440, 0.0
    %vm542 = vcmp.gt.f32.partialorder %v441, 0.0
    %vm543 = vcmp.gt.f32.partialorder %v442, 0.0
    %vm544 = vcmp.gt.f32.partialorder %v443, 0.0
    %vm545 = vcmp.gt.f32.partialorder %v444, 0.0
    %vm546 = vcmp.gt.f32.partialorder %v445, 0.0
    %vm547 = vcmp.gt.f32.partialorder %v446, 0.0
    %vm548 = vcmp.gt.f32.partialorder %v447, 0.0
    %vm549 = vmand %vm517, %vm533
    %vm550 = vmand %vm518, %vm534
    %vm551 = vmand %vm519, %vm535
    %vm552 = vmand %vm520, %vm536
    %vm553 = vmand %vm521, %vm537
    %vm554 = vmand %vm522, %vm538
    %vm555 = vmand %vm523, %vm539
    %vm556 = vmand %vm524, %vm540
    %vm557 = vmand %vm525, %vm541
    %vm558 = vmand %vm526, %vm542
    %vm559 = vmand %vm527, %vm543
    %vm560 = vmand %vm528, %vm544
    %vm561 = vmand %vm529, %vm545
    %vm562 = vmand %vm530, %vm546
    %vm563 = vmand %vm531, %vm547
    %vm564 = vmand %vm532, %vm548
    %v565 = vld [vmem:[#allocation2] sm:$0xff]
    %v566 = vsel %vm549, %v432, 0.0
    %v567 = vsel %vm550, %v433, 0.0
    %v568 = vsel %vm551, %v434, 0.0
    %v569 = vsel %vm552, %v435, 0.0
    %v570 = vsel %vm553, %v436, 0.0
    %v571 = vsel %vm554, %v437, 0.0
    %v572 = vsel %vm555, %v438, 0.0
    %v573 = vsel %vm556, %v439, 0.0
    %v574 = vsel %vm557, %v440, 0.0
    %v575 = vsel %vm558, %v441, 0.0
    %v576 = vsel %vm559, %v442, 0.0
    %v577 = vsel %vm560, %v443, 0.0
    %v578 = vsel %vm561, %v444, 0.0
    %v579 = vsel %vm562, %v445, 0.0
    %v580 = vsel %vm563, %v446, 0.0
    %v581 = vsel %vm564, %v447, 0.0
    %v582 = vadd.f32 %v566, %v567
    %v583 = vadd.f32 %v582, %v568
    %v584 = vadd.f32 %v583, %v569
    %v585 = vadd.f32 %v584, %v570
    %v586 = vadd.f32 %v585, %v571
    %v587 = vadd.f32 %v586, %v572
    %v588 = vadd.f32 %v587, %v573
    %v589 = vadd.f32 %v588, %v574
    %v590 = vadd.f32 %v589, %v575
    %v591 = vadd.f32 %v590, %v576
    %v592 = vadd.f32 %v591, %v577
    %v593 = vadd.f32 %v592, %v578
    %v594 = vadd.f32 %v593, %v579
    %v595 = vadd.f32 %v594, %v580
    %v596 = vadd.f32 %v595, %v581
    %v597 = vadd.f32 %v565, %v596
    %598 = vst [vmem:[#allocation2] sm:$0xff] %v597
    %v599 = vld [vmem:[#allocation4] sm:$0xff]
    %v600 = vsel %vm549, 1.0, 0.0
    %v601 = vsel %vm550, 1.0, 0.0
    %v602 = vsel %vm551, 1.0, 0.0
    %v603 = vsel %vm552, 1.0, 0.0
    %v604 = vsel %vm553, 1.0, 0.0
    %v605 = vsel %vm554, 1.0, 0.0
    %v606 = vsel %vm555, 1.0, 0.0
    %v607 = vsel %vm556, 1.0, 0.0
    %v608 = vsel %vm557, 1.0, 0.0
    %v609 = vsel %vm558, 1.0, 0.0
    %v610 = vsel %vm559, 1.0, 0.0
    %v611 = vsel %vm560, 1.0, 0.0
    %v612 = vsel %vm561, 1.0, 0.0
    %v613 = vsel %vm562, 1.0, 0.0
    %v614 = vsel %vm563, 1.0, 0.0
    %v615 = vsel %vm564, 1.0, 0.0
    %v616 = vadd.f32 %v600, %v601
    %v617 = vadd.f32 %v616, %v602
    %v618 = vadd.f32 %v617, %v603
    %v619 = vadd.f32 %v618, %v604
    %v620 = vadd.f32 %v619, %v605
    %v621 = vadd.f32 %v620, %v606
    %v622 = vadd.f32 %v621, %v607
    %v623 = vadd.f32 %v622, %v608
    %v624 = vadd.f32 %v623, %v609
    %v625 = vadd.f32 %v624, %v610
    %v626 = vadd.f32 %v625, %v611
    %v627 = vadd.f32 %v626, %v612
    %v628 = vadd.f32 %v627, %v613
    %v629 = vadd.f32 %v628, %v614
    %v630 = vadd.f32 %v629, %v615
    %v631 = vadd.f32 %v599, %v630
    %632 = vst [vmem:[#allocation4] sm:$0xff] %v631
    // Predicated region
    $region30: #{tpu_custom_call.1} parent=1 // pred_check
      _
    $region31: #{tpu_custom_call.1} parent=1 // pred_check_branch
      %634 = sbr.rel (0) target = $region33
    $region32: #{tpu_custom_call.1} parent=1 // pred_region
      %s636 = ssub.s32 128, 128
      %637 = vsyncadd [#allocation3], %s636
      %s639 = sshll.u32 [#allocation2], 4
      %s640 = int_to_ptr.vmem [resolvable:$true] %s639
      %642 = dma.vmem_to_hbm [thread:$0]  %s640, 128, %s6, [#allocation3]
    $region33: #{tpu_custom_call.1} parent=1 // pred_fallthru
      _
    // Predicated region
    $region34: #{tpu_custom_call.1} parent=1 // pred_check
      _
    $region35: #{tpu_custom_call.1} parent=1 // pred_check_branch
      %644 = sbr.rel (0) target = $region37
    $region36: #{tpu_custom_call.1} parent=1 // pred_region
      %s646 = ssub.s32 128, 128
      %647 = vsyncadd [#allocation5], %s646
      %s649 = sshll.u32 [#allocation4], 4
      %s650 = int_to_ptr.vmem [resolvable:$true] %s649
      %652 = dma.vmem_to_hbm [thread:$0]  %s650, 128, %s7, [#allocation5]
    $region37: #{tpu_custom_call.1} parent=1 // pred_fallthru
      _
    // Predicated region
    $region38: #{tpu_custom_call.1} parent=1 // pred_check
      _
    $region39: #{tpu_custom_call.1} parent=1 // pred_check_branch
      %654 = sbr.rel (0) target = $region41
    $region40: #{tpu_custom_call.1} parent=1 // pred_region
      %655 = dma.done [#allocation3], 128
    $region41: #{tpu_custom_call.1} parent=1 // pred_fallthru
      _
    // Predicated region
    $region42: #{tpu_custom_call.1} parent=1 // pred_check
      _
    $region43: #{tpu_custom_call.1} parent=1 // pred_check_branch
      %657 = sbr.rel (0) target = $region45
    $region44: #{tpu_custom_call.1} parent=1 // pred_region
      %658 = dma.done [#allocation5], 128
    $region45: #{tpu_custom_call.1} parent=1 // pred_fallthru
      _
    %659 = vsyncpa [#allocation3], 1
    %660 = vsyncpa [#allocation5], 1

</llo_original>
